<compile_context>
chip_gen: v6e
topology: v6e:2x2x1
jax: 0.10.0
libtpu: 0.0.40
codegen_flags: <defaults>
</compile_context>

<pallas_src>
import math

import jax
import jax.numpy as jnp
import numpy as np
from jax.experimental import pallas as pl
from jax.experimental.pallas import tpu as pltpu

BN_EPS = 1e-5


# ----------------------------------------------------------------------------
# Pallas kernel: fused (1x1 conv as matmul, BN scale pre-folded into weight)
#                + bias + ReLU, output cast to activation dtype.
# ----------------------------------------------------------------------------
def _fc_kernel(a_ref, b_ref, bias_ref, o_ref):
    """One row-block of the fused FC forward.

    a_ref    : (TR, K)  input rows (K = pack*Cin), lane-dense when packed
    b_ref    : (K, C)   BN-folded weight (block-diagonal if packed), C = pack*Cout
    bias_ref : (1, C)   folded BN bias (f32)
    o_ref    : (TR, C)  output slab, stored in activation dtype (bf16 default)
    """
    y = jnp.dot(a_ref[...], b_ref[...], preferred_element_type=jnp.float32)
    y = y + bias_ref[...]                               # folded BN bias (f32 epilogue)
    o_ref[...] = jnp.maximum(y, 0.0).astype(o_ref.dtype)  # ReLU + narrow store


# ----------------------------------------------------------------------------
# Pack / tile selection
# ----------------------------------------------------------------------------
def _choose_pack(M, Cin, Cout, *, weight_bytes_cap=4 << 20, weight_itemsize=2):
    """Fold `pack` spatial positions into the lane axis so the output store is
    128-lane dense. pack = 128 // gcd(Cout, 128); fall back to 1 if it doesn't
    divide M or the packed (block-diagonal) weight would be too big for VMEM."""
    if Cout % 128 == 0:
        return 1
    pack = 128 // math.gcd(Cout, 128)
    if M % pack != 0:
        return 1
    if (pack * Cin) * (pack * Cout) * weight_itemsize > weight_bytes_cap:
        return 1
    return pack


def _pick_row_block(R, K, C, in_bytes, out_bytes, *,
                    budget_bytes=24 << 20, cap=1024):
    """Largest sublane-aligned row tile whose double-buffered input+output
    streams fit the VMEM budget (weight/bias live outside this budget)."""
    if R <= 8:
        return R
    per_row = 2 * K * in_bytes + 2 * C * out_bytes      # 2x in + 2x out buffers
    tr = max(8, min(cap, budget_bytes // per_row))
    tr = (tr // 8) * 8
    tr = min(tr, ((R + 7) // 8) * 8)                    # don't exceed (padded) R
    return tr


# ----------------------------------------------------------------------------
# Parameter preparation (ONCE per layer, not per call)
# ----------------------------------------------------------------------------
def fc_prepare(w, gamma, beta, running_mean, running_var, *, pack,
               dtype=jnp.bfloat16, eps=BN_EPS):
    """Fold BN into the weight/bias, build the block-diagonal packed weight,
    and pre-cast the weight to the matmul dtype. Returns (w_packed, bias_packed)."""
    scale = gamma / jnp.sqrt(running_var + eps)
    bias = beta - running_mean * scale
    w_folded = w * scale[None, :]                       # BN scale folded into weight
    if pack > 1:
        w_packed = jnp.kron(jnp.eye(pack, dtype=w.dtype), w_folded)
        bias_packed = jnp.tile(bias, pack)
    else:
        w_packed = w_folded
        bias_packed = bias
    return w_packed.astype(dtype), bias_packed.astype(jnp.float32)[None, :]


# ----------------------------------------------------------------------------
# Wrapper
# ----------------------------------------------------------------------------
def fc_forward(x, w_packed, bias_packed, *, pack=1, row_block=None,
               vmem_limit_bytes=48 << 20):
    """FC forward: relu(bn(conv1x1(x))). NHWC activations, BN pre-folded into
    (w_packed, bias_packed) by fc_prepare. Output dtype == activation dtype."""
    N, H, W, Cin = x.shape
    K, C = w_packed.shape
    assert K == pack * Cin, "packed weight does not match pack*Cin"
    Cout = C // pack
    M = N * H * W
    assert M % pack == 0, "pack must divide N*H*W"
    R = M // pack

    a = x.reshape(R, K)                                 # free, contiguous reshape

    out_dtype = x.dtype                                 # narrow (bf16) store by default
    in_bytes = jnp.dtype(x.dtype).itemsize
    out_bytes = jnp.dtype(out_dtype).itemsize
    tr = row_block if row_block is not None else _pick_row_block(
        R, K, C, in_bytes, out_bytes)

    grid = (pl.cdiv(R, tr),)                            # padded/masked tail block

    out = pl.pallas_call(
        _fc_kernel,
        out_shape=jax.ShapeDtypeStruct((R, C), out_dtype),
        grid=grid,
        in_specs=[
            pl.BlockSpec((tr, K), lambda i: (i, 0)),    # streamed rows
            pl.BlockSpec((K, C), lambda i: (0, 0)),     # resident weight
            pl.BlockSpec((1, C), lambda i: (0, 0)),     # resident bias
        ],
        out_specs=pl.BlockSpec((tr, C), lambda i: (i, 0)),
        compiler_params=pltpu.CompilerParams(
            dimension_semantics=("parallel",),          # megacore on v7x
            vmem_limit_bytes=vmem_limit_bytes),
    )(a, w_packed, bias_packed)

    return out.reshape(N, H, W, Cout)


# ----------------------------------------------------------------------------
# Pure-JAX reference (for correctness check)
# ----------------------------------------------------------------------------
def fc_forward_ref(x, w, gamma, beta, running_mean, running_var, eps=BN_EPS):
    Cin, Cout = w.shape
    y = jax.lax.conv_general_dilated(
        x, w.reshape(1, 1, Cin, Cout),
        window_strides=(1, 1), padding="VALID",
        dimension_numbers=("NHWC", "HWIO", "NHWC"),
        precision=jax.lax.Precision.HIGHEST)
    scale = gamma / jnp.sqrt(running_var + eps)
    bias = beta - running_mean * scale
    y = y * scale.reshape(1, 1, 1, -1) + bias.reshape(1, 1, 1, -1)
    return jnp.maximum(y, 0.0)


# ----------------------------------------------------------------------------
if __name__ == "__main__":
    key = jax.random.PRNGKey(0)
    k_w, k_g, k_b, k_m, k_v, k_x = jax.random.split(key, 6)

    N, H, W = 2, 16, 16
    in_ch, out_ch = 8, 8

    # NHWC input; the PyTorch NCHW equivalent would be (2, 8, 16, 16).
    x_f32 = jax.random.normal(k_x, (N, H, W, in_ch), jnp.float32)
    w = jax.random.normal(k_w, (in_ch, out_ch), jnp.float32) / math.sqrt(in_ch)
    gamma = 1.0 + 0.1 * jax.random.normal(k_g, (out_ch,), jnp.float32)
    beta = 0.1 * jax.random.normal(k_b, (out_ch,), jnp.float32)
    r_mean = 0.1 * jax.random.normal(k_m, (out_ch,), jnp.float32)
    r_var = jnp.abs(jax.random.normal(k_v, (out_ch,), jnp.float32)) + 0.5

    M = N * H * W
    pack = _choose_pack(M, in_ch, out_ch)               # -> 16 here (C = 128 lanes)

    # --- f32 path: tight structural check of the fused kernel ---
    w_p32, bias_p32 = fc_prepare(w, gamma, beta, r_mean, r_var,
                                 pack=pack, dtype=jnp.float32)
    out_f32 = jax.block_until_ready(
        fc_forward(x_f32, w_p32, bias_p32, pack=pack))
    ref = jax.block_until_ready(
        fc_forward_ref(x_f32, w, gamma, beta, r_mean, r_var))
    assert out_f32.shape == (N, H, W, out_ch)
    np.testing.assert_allclose(np.asarray(out_f32), np.asarray(ref),
                               rtol=1e-4, atol=1e-4)

    # --- default bf16 path: bf16 activations, bf16 folded weight, bf16 output ---
    x_bf16 = x_f32.astype(jnp.bfloat16)
    w_pb, bias_pb = fc_prepare(w, gamma, beta, r_mean, r_var,
                               pack=pack, dtype=jnp.bfloat16)
    out_bf16 = jax.block_until_ready(
        fc_forward(x_bf16, w_pb, bias_pb, pack=pack))
    assert out_bf16.dtype == jnp.bfloat16
    ref_b = jax.block_until_ready(
        fc_forward_ref(x_bf16.astype(jnp.float32), w, gamma, beta, r_mean, r_var))
    np.testing.assert_allclose(np.asarray(out_bf16, dtype=np.float32),
                               np.asarray(ref_b), rtol=4e-2, atol=4e-2)

    print("KERNEL_OK")
</pallas_src>

<mosaic_0001>
module attributes {stable_mosaic.version = 11 : i64} {
  func.func @_fc_kernel(%arg0: i32, %arg1: memref<32x128xf32, #tpu.memory_space<vmem>>, %arg2: memref<128x128xf32, #tpu.memory_space<vmem>>, %arg3: memref<1x128xf32, #tpu.memory_space<vmem>>, %arg4: memref<32x128xf32, #tpu.memory_space<vmem>>) attributes {dimension_semantics = [#tpu.dimension_semantics<parallel>], iteration_bounds = array<i64: 1>, scalar_prefetch = 0 : i64, scratch_operands = 0 : i64, tpu.core_type = #tpu.core_type<tc>, window_params = [{transform_indices = @transform_0, window_bounds = array<i64: 32, 128>}, {pipeline_mode = #tpu.pipeline_mode<synchronous>, transform_indices = @transform_1, window_bounds = array<i64: 128, 128>}, {pipeline_mode = #tpu.pipeline_mode<synchronous>, transform_indices = @transform_2, window_bounds = array<i64: 1, 128>}, {transform_indices = @transform_3, window_bounds = array<i64: 32, 128>}]} {
    %c0 = arith.constant 0 : index
    %c0_0 = arith.constant 0 : index
    %0 = vector.load %arg1[%c0, %c0_0] : memref<32x128xf32, #tpu.memory_space<vmem>>, vector<32x128xf32>
    %c0_1 = arith.constant 0 : index
    %c0_2 = arith.constant 0 : index
    %1 = vector.load %arg2[%c0_1, %c0_2] : memref<128x128xf32, #tpu.memory_space<vmem>>, vector<128x128xf32>
    %cst = arith.constant dense<0.000000e+00> : vector<32x128xf32>
    %2 = tpu.matmul %0, %1, %cst {dimension_numbers = #tpu.dot_dimension_numbers<[1], [0], [0], [1], [0, 0, 1, 1], [], []>} : vector<32x128xf32>, vector<128x128xf32>, vector<32x128xf32> -> vector<32x128xf32>
    %c0_3 = arith.constant 0 : index
    %c0_4 = arith.constant 0 : index
    %3 = vector.load %arg3[%c0_3, %c0_4] : memref<1x128xf32, #tpu.memory_space<vmem>>, vector<1x128xf32>
    %4 = vector.broadcast %3 : vector<1x128xf32> to vector<32x128xf32>
    %5 = arith.addf %2, %4 : vector<32x128xf32>
    %cst_5 = arith.constant 0.000000e+00 : f32
    %6 = vector.broadcast %cst_5 : f32 to vector<32x128xf32>
    %7 = arith.maximumf %5, %6 : vector<32x128xf32>
    %c0_6 = arith.constant 0 : index
    %c0_7 = arith.constant 0 : index
    %8 = vector.load %arg4[%c0_6, %c0_7] : memref<32x128xf32, #tpu.memory_space<vmem>>, vector<32x128xf32>
    tpu.vector_store %arg4[%c0_6, %c0_7], %7 {strides = array<i32>} : memref<32x128xf32, #tpu.memory_space<vmem>>, vector<32x128xf32>,
    return
  }
  func.func @transform_0(%arg0: i32) -> (i32, i32) {
    %c0_i32 = arith.constant 0 : i32
    %c0_i32_0 = arith.constant 0 : i32
    return %arg0, %c0_i32 : i32, i32
  }
  func.func @transform_1(%arg0: i32) -> (i32, i32) {
    %c0_i32 = arith.constant 0 : i32
    %c0_i32_0 = arith.constant 0 : i32
    %c0_i32_1 = arith.constant 0 : i32
    return %c0_i32, %c0_i32_0 : i32, i32
  }
  func.func @transform_2(%arg0: i32) -> (i32, i32) {
    %c0_i32 = arith.constant 0 : i32
    %c0_i32_0 = arith.constant 0 : i32
    %c0_i32_1 = arith.constant 0 : i32
    return %c0_i32, %c0_i32_0 : i32, i32
  }
  func.func @transform_3(%arg0: i32) -> (i32, i32) {
    %c0_i32 = arith.constant 0 : i32
    %c0_i32_0 = arith.constant 0 : i32
    return %arg0, %c0_i32 : i32, i32
  }
}

</mosaic_0001>

<llo_original>
// kernel: tpu_custom_call.1
$region0: #{tpu_custom_call.1}
  #allocation0 [shape = 'u32[]', space=smem, size = 0x4, offset = 0x4, fixed_abs, tag = 'smem constant byte address 0x4 - core index']
  #allocation1 [shape = 'u32[144,128]{1,0:T(1,128)}', space=vmem, size = 0x12000, scoped, tag = 'internal scratch']
  %s0 = inlined_call_operand.hbm [shape: f32[32,128], index: 0, kind: input, shape index: {}]
  %s1 = inlined_call_operand.hbm [shape: f32[128,128], index: 1, kind: input, shape index: {}]
  %s2 = inlined_call_operand.vmem [shape: f32[1,128], index: 2, kind: input, shape index: {}]
  %s3 = inlined_call_operand.hbm [shape: f32[32,128], index: 3, kind: output, shape index: {}]
  %s4 = sld [smem:[#allocation0]]
  $region30: #{tpu_custom_call.1} parent=0
    _
  %s6 = ssub.s32 1, %s4
  %s7 = scalar_select 0, %s6, %s4
  $region1: #{tpu_custom_call.1} parent=0
    #allocation2 [shape = 'u8[16384]{0}', space=vmem, size = 0x4000, scoped, tag = 'input window, operand 0, single buffered']
    #allocation3 [shape = 's32[1]{0}', space=sflag, size = 0x4, scoped, tag = 'scoped memory for tpu_custom_call.1']
    #allocation4 [shape = 's32[1]{0}', space=sflag, size = 0x4, scoped, tag = 'scoped memory for tpu_custom_call.1']
    #allocation5 [shape = 'u8[65536]{0}', space=vmem, size = 0x10000, scoped, tag = 'input window, operand 1, single buffered']
    #allocation6 [shape = 's32[1]{0}', space=sflag, size = 0x4, scoped, tag = 'scoped memory for tpu_custom_call.1']
    #allocation7 [shape = 'u8[16384]{0}', space=vmem, size = 0x4000, scoped, tag = 'output window, operand 0, single buffered']
    %8 = vsyncpa [#allocation3], 0
    %9 = vsyncpa [#allocation6], 0
    %10 = vsyncpa [#allocation4], 0
    // Predicated region
    $region2: #{tpu_custom_call.1} parent=1 // pred_check
      _
    $region3: #{tpu_custom_call.1} parent=1 // pred_check_branch
      %12 = sbr.rel (0) target = $region5
    $region4: #{tpu_custom_call.1} parent=1 // pred_region
      %s14 = ssub.s32 512, 512
      %15 = vsyncadd [#allocation3], %s14
      %s16 = sshll.u32 [#allocation2], 4
      %s17 = int_to_ptr.vmem [resolvable:$true] %s16
      %22 = dma.hbm_to_vmem [thread:$0]  %s0, 512, %s17, [#allocation3], 128, 128, 8
    $region5: #{tpu_custom_call.1} parent=1 // pred_fallthru
      _
    // Predicated region
    $region6: #{tpu_custom_call.1} parent=1 // pred_check
      _
    $region7: #{tpu_custom_call.1} parent=1 // pred_check_branch
      %24 = sbr.rel (0) target = $region9
    $region8: #{tpu_custom_call.1} parent=1 // pred_region
      %s26 = ssub.s32 2048, 2048
      %27 = vsyncadd [#allocation6], %s26
      %s28 = sshll.u32 [#allocation5], 4
      %s29 = int_to_ptr.vmem [resolvable:$true] %s28
      %34 = dma.hbm_to_vmem [thread:$0]  %s1, 2048, %s29, [#allocation6], 128, 128, 8
    $region9: #{tpu_custom_call.1} parent=1 // pred_fallthru
      _
    // Predicated region
    $region10: #{tpu_custom_call.1} parent=1 // pred_check
      _
    $region11: #{tpu_custom_call.1} parent=1 // pred_check_branch
      %36 = sbr.rel (0) target = $region13
    $region12: #{tpu_custom_call.1} parent=1 // pred_region
      _
    $region13: #{tpu_custom_call.1} parent=1 // pred_fallthru
      _
    // Predicated region
    $region14: #{tpu_custom_call.1} parent=1 // pred_check
      _
    $region15: #{tpu_custom_call.1} parent=1 // pred_check_branch
      %38 = sbr.rel (0) target = $region17
    $region16: #{tpu_custom_call.1} parent=1 // pred_region
      %39 = dma.done [#allocation3], 512
    $region17: #{tpu_custom_call.1} parent=1 // pred_fallthru
      _
    // Predicated region
    $region18: #{tpu_custom_call.1} parent=1 // pred_check
      _
    $region19: #{tpu_custom_call.1} parent=1 // pred_check_branch
      %41 = sbr.rel (0) target = $region21
    $region20: #{tpu_custom_call.1} parent=1 // pred_region
      %42 = dma.done [#allocation6], 2048
    $region21: #{tpu_custom_call.1} parent=1 // pred_fallthru
      _
    %v43 = vld [vmem:[#allocation2] sm:$0xff]
    %v44 = vld [vmem:[#allocation2 + $0x8] sm:$0xff]
    %v45 = vld [vmem:[#allocation2 + $0x10] sm:$0xff]
    %v46 = vld [vmem:[#allocation2 + $0x18] sm:$0xff]
    %v47 = vld [vmem:[#allocation5] sm:$0xff]
    %v48 = vld [vmem:[#allocation5 + $0x8] sm:$0xff]
    %v49 = vld [vmem:[#allocation5 + $0x10] sm:$0xff]
    %v50 = vld [vmem:[#allocation5 + $0x18] sm:$0xff]
    %v51 = vld [vmem:[#allocation5 + $0x20] sm:$0xff]
    %v52 = vld [vmem:[#allocation5 + $0x28] sm:$0xff]
    %v53 = vld [vmem:[#allocation5 + $0x30] sm:$0xff]
    %v54 = vld [vmem:[#allocation5 + $0x38] sm:$0xff]
    %v55 = vld [vmem:[#allocation5 + $0x40] sm:$0xff]
    %v56 = vld [vmem:[#allocation5 + $0x48] sm:$0xff]
    %v57 = vld [vmem:[#allocation5 + $0x50] sm:$0xff]
    %v58 = vld [vmem:[#allocation5 + $0x58] sm:$0xff]
    %v59 = vld [vmem:[#allocation5 + $0x60] sm:$0xff]
    %v60 = vld [vmem:[#allocation5 + $0x68] sm:$0xff]
    %v61 = vld [vmem:[#allocation5 + $0x70] sm:$0xff]
    %v62 = vld [vmem:[#allocation5 + $0x78] sm:$0xff]
    %v63 = vld [vmem:[%s2] sm:$0x1]
    %v65 = vlaneseq
    %v66 = vshrl.u32 %v65, 7
    %v67 = vsub.s32 0, %v66
    %v68 = vrot.slane %v63, %v67
    %70 = vmatprep.subr.mxu0 0.0
    %71 = vmatpush1.msra.mxu0 %v62
    %72 = vmatprep.subr.mxu0 0.0
    %73 = vmatpush1.msra.mxu0 %v61
    %74 = vmatprep.subr.mxu0 0.0
    %75 = vmatpush1.msra.mxu0 %v60
    %76 = vmatprep.subr.mxu0 0.0
    %77 = vmatpush1.msra.mxu0 %v59
    %78 = vmatprep.subr.mxu0 0.0
    %79 = vmatpush1.msra.mxu0 %v58
    %80 = vmatprep.subr.mxu0 0.0
    %81 = vmatpush1.msra.mxu0 %v57
    %82 = vmatprep.subr.mxu0 0.0
    %83 = vmatpush1.msra.mxu0 %v56
    %84 = vmatprep.subr.mxu0 0.0
    %85 = vmatpush1.msra.mxu0 %v55
    %86 = vmatprep.subr.mxu0 0.0
    %87 = vmatpush1.msra.mxu0 %v54
    %88 = vmatprep.subr.mxu0 0.0
    %89 = vmatpush1.msra.mxu0 %v53
    %90 = vmatprep.subr.mxu0 0.0
    %91 = vmatpush1.msra.mxu0 %v52
    %92 = vmatprep.subr.mxu0 0.0
    %93 = vmatpush1.msra.mxu0 %v51
    %94 = vmatprep.subr.mxu0 0.0
    %95 = vmatpush1.msra.mxu0 %v50
    %96 = vmatprep.subr.mxu0 0.0
    %97 = vmatpush1.msra.mxu0 %v49
    %98 = vmatprep.subr.mxu0 0.0
    %99 = vmatpush1.msra.mxu0 %v48
    %100 = vmatprep.subr.mxu0 0.0
    %101 = vmatpush1.msra.mxu0 %v47
    %102 = vmatprep.subr.mxu0 0.0
    %103 = vmatpush2.msra.mxu0 0.0
    %104 = vmatprep.subr.mxu0 0.0
    %105 = vmatpush2.msra.mxu0 0.0
    %106 = vmatprep.subr.mxu0 0.0
    %107 = vmatpush2.msra.mxu0 0.0
    %108 = vmatprep.subr.mxu0 0.0
    %109 = vmatpush2.msra.mxu0 0.0
    %110 = vmatprep.subr.mxu0 0.0
    %111 = vmatpush2.msra.mxu0 0.0
    %112 = vmatprep.subr.mxu0 0.0
    %113 = vmatpush2.msra.mxu0 0.0
    %114 = vmatprep.subr.mxu0 0.0
    %115 = vmatpush2.msra.mxu0 0.0
    %116 = vmatprep.subr.mxu0 0.0
    %117 = vmatpush2.msra.mxu0 0.0
    %118 = vmatprep.subr.mxu0 0.0
    %119 = vmatpush2.msra.mxu0 0.0
    %120 = vmatprep.subr.mxu0 0.0
    %121 = vmatpush2.msra.mxu0 0.0
    %122 = vmatprep.subr.mxu0 0.0
    %123 = vmatpush2.msra.mxu0 0.0
    %124 = vmatprep.subr.mxu0 0.0
    %125 = vmatpush2.msra.mxu0 0.0
    %126 = vmatprep.subr.mxu0 0.0
    %127 = vmatpush2.msra.mxu0 0.0
    %128 = vmatprep.subr.mxu0 0.0
    %129 = vmatpush2.msra.mxu0 0.0
    %130 = vmatprep.subr.mxu0 0.0
    %131 = vmatpush2.msra.mxu0 0.0
    %132 = vmatprep.subr.mxu0 0.0
    %133 = vmatpush2.msra.mxu0 0.0
    %134 = vmatprep.mubr.f32.mxu0 0.0
    %135 = vmatmul.mubr.f32.gmra.mxu0 %v43
    %v136 = vpop.f32.mrf.mxu0
    %v137 = vadd.f32 %v68, %v136
    %v138 = vpop.f32.mrf.mxu0
    %139 = vmatprep.mubr.f32.mxu0 0.0
    %140 = vmatmul.mubr.f32.gmra.mxu0 %v44
    %v141 = vpop.f32.mrf.mxu0
    %v142 = vadd.f32 %v68, %v141
    %v143 = vpop.f32.mrf.mxu0
    %144 = vmatprep.mubr.f32.mxu0 0.0
    %145 = vmatmul.mubr.f32.gmra.mxu0 %v45
    %v146 = vpop.f32.mrf.mxu0
    %v147 = vadd.f32 %v68, %v146
    %v148 = vpop.f32.mrf.mxu0
    %149 = vmatprep.mubr.f32.mxu0 0.0
    %150 = vmatmul.mubr.f32.gmra.mxu0 %v46
    %v151 = vpop.f32.mrf.mxu0
    %v152 = vadd.f32 %v68, %v151
    %v153 = vpop.f32.mrf.mxu0
    %154 = vdwg.mxu0
    %v155 = vmax.f32 %v137, 0.0
    %v156 = vmax.f32 %v142, 0.0
    %v157 = vmax.f32 %v147, 0.0
    %v158 = vmax.f32 %v152, 0.0
    %159 = vst [vmem:[#allocation7] sm:$0xff] %v155
    %160 = vst [vmem:[#allocation7 + $0x8] sm:$0xff] %v156
    %161 = vst [vmem:[#allocation7 + $0x10] sm:$0xff] %v157
    %162 = vst [vmem:[#allocation7 + $0x18] sm:$0xff] %v158
    // Predicated region
    $region22: #{tpu_custom_call.1} parent=1 // pred_check
      _
    $region23: #{tpu_custom_call.1} parent=1 // pred_check_branch
      %164 = sbr.rel (0) target = $region25
    $region24: #{tpu_custom_call.1} parent=1 // pred_region
      %s166 = ssub.s32 512, 512
      %167 = vsyncadd [#allocation4], %s166
      %s168 = sshll.u32 [#allocation7], 4
      %s169 = int_to_ptr.vmem [resolvable:$true] %s168
      %174 = dma.vmem_to_hbm [thread:$0]  %s169, 512, %s3, [#allocation4], 128, 128, 8
    $region25: #{tpu_custom_call.1} parent=1 // pred_fallthru
      _
    // Predicated region
    $region26: #{tpu_custom_call.1} parent=1 // pred_check
      _
    $region27: #{tpu_custom_call.1} parent=1 // pred_check_branch
      %176 = sbr.rel (0) target = $region29
    $region28: #{tpu_custom_call.1} parent=1 // pred_region
      %177 = dma.done [#allocation4], 512
    $region29: #{tpu_custom_call.1} parent=1 // pred_fallthru
      _
    %178 = vsyncpa [#allocation3], 1
    %179 = vsyncpa [#allocation6], 1
    %180 = vsyncpa [#allocation4], 1

</llo_original>
